<compile_context>
chip_gen: v5e
topology: v5e:2x2
jax: 0.10.0
libtpu: 0.0.40
codegen_flags: <defaults>
</compile_context>

<pallas_src>
import functools

import jax
import jax.numpy as jnp
from jax.experimental import pallas as pl
from jax.experimental.pallas import tpu as pltpu


def _round_up(x, m):
    return ((x + m - 1) // m) * m


def _stacked_gru_kernel(x0_ref, h_ref, wih_ref, whh_ref, bih_ref, bhh_ref,
                        out_ref, x_scr, *, hp):
    """One grid step == one GRU layer.  x_scr carries the activation between layers."""
    layer = pl.program_id(0)

    # First layer: load the (padded) external input into the carried activation.
    @pl.when(layer == 0)
    def _():
        x_scr[...] = x0_ref[...].astype(jnp.float32)

    x = x_scr[...]                              # (B, K_pad) f32
    h = h_ref[...].astype(jnp.float32)          # (B, H_pad)

    gi = jnp.dot(x, wih_ref[...], preferred_element_type=jnp.float32) + bih_ref[...]
    gh = jnp.dot(h, whh_ref[...], preferred_element_type=jnp.float32) + bhh_ref[...]

    # Gate blocks are lane-aligned (hp is a multiple of 128) -> free views.
    i_r = gi[:, 0 * hp:1 * hp]
    i_z = gi[:, 1 * hp:2 * hp]
    i_n = gi[:, 2 * hp:3 * hp]
    h_r = gh[:, 0 * hp:1 * hp]
    h_z = gh[:, 1 * hp:2 * hp]
    h_n = gh[:, 2 * hp:3 * hp]

    r = jax.nn.sigmoid(i_r + h_r)
    z = jax.nn.sigmoid(i_z + h_z)
    n = jnp.tanh(i_n + r * h_n)
    h_new = (1.0 - z) * n + z * h               # (B, H_pad), padded lanes stay 0

    # Lane-dense store of this layer's state slab.
    out_ref[...] = h_new.astype(out_ref.dtype)

    # Carry to the next layer (dropout is identity in eval mode).
    # Columns >= hp of x_scr hit zero weight rows for layers > 0, so no clearing needed.
    x_scr[:, :hp] = h_new


def init_stacked_gru_params(key, num_layers, input_size, rnn_size, dtype=jnp.float32):
    """PyTorch-style init: U(-1/sqrt(H), 1/sqrt(H)), raw (unpadded) layout."""
    params = []
    bound = 1.0 / (rnn_size ** 0.5)
    in_dim = input_size
    for _ in range(num_layers):
        key, k1, k2, k3, k4 = jax.random.split(key, 5)
        params.append(dict(
            w_ih=jax.random.uniform(k1, (3 * rnn_size, in_dim), dtype, -bound, bound),
            w_hh=jax.random.uniform(k2, (3 * rnn_size, rnn_size), dtype, -bound, bound),
            b_ih=jax.random.uniform(k3, (3 * rnn_size,), dtype, -bound, bound),
            b_hh=jax.random.uniform(k4, (3 * rnn_size,), dtype, -bound, bound),
        ))
        in_dim = rnn_size
    return params


def pack_stacked_gru_params(raw_params, input_size, rnn_size, dtype=jnp.float32):
    """Stack + transpose + zero-pad per-layer params for the fused kernel.

    For production-size models on v7x (64 MiB VMEM) use dtype=jnp.bfloat16 for the
    weights (accumulation is still f32 via preferred_element_type).
    """
    L = len(raw_params)
    H = rnn_size
    Hp = _round_up(H, 128)
    Kp = max(_round_up(input_size, 128), Hp)

    wih = jnp.zeros((L, Kp, 3 * Hp), dtype)
    whh = jnp.zeros((L, Hp, 3 * Hp), dtype)
    bih = jnp.zeros((L, 1, 3 * Hp), dtype)
    bhh = jnp.zeros((L, 1, 3 * Hp), dtype)

    in_dim = input_size
    for l, p in enumerate(raw_params):
        for g in range(3):
            wih = wih.at[l, :in_dim, g * Hp:g * Hp + H].set(
                p["w_ih"][g * H:(g + 1) * H, :].T.astype(dtype))
            whh = whh.at[l, :H, g * Hp:g * Hp + H].set(
                p["w_hh"][g * H:(g + 1) * H, :].T.astype(dtype))
            bih = bih.at[l, 0, g * Hp:g * Hp + H].set(
                p["b_ih"][g * H:(g + 1) * H].astype(dtype))
            bhh = bhh.at[l, 0, g * Hp:g * Hp + H].set(
                p["b_hh"][g * H:(g + 1) * H].astype(dtype))
        in_dim = rnn_size

    return dict(wih=wih, whh=whh, bih=bih, bhh=bhh,
                num_layers=L, rnn_size=H, input_size=input_size,
                h_pad=Hp, k_pad=Kp)


def stacked_gru_cell_forward(packed, x, h):
    """Mirrors StackedGRUCell.forward: returns (last_h, stacked_h)."""
    L = packed["num_layers"]
    H = packed["rnn_size"]
    Hp = packed["h_pad"]
    Kp = packed["k_pad"]
    B = x.shape[0]

    # Zero-pad input and initial hidden state to lane-aligned widths.
    x_p = jnp.zeros((B, Kp), x.dtype).at[:, :x.shape[1]].set(x)
    h_p = jnp.zeros((L, B, Hp), h.dtype).at[:, :, :H].set(h)

    kernel = functools.partial(_stacked_gru_kernel, hp=Hp)

    out = pl.pallas_call(
        kernel,
        out_shape=jax.ShapeDtypeStruct((L, B, Hp), x.dtype),
        grid_spec=pltpu.PrefetchScalarGridSpec(
            num_scalar_prefetch=0,
            grid=(L,),
            in_specs=[
                pl.BlockSpec((B, Kp), lambda l: (0, 0)),                  # x (layer 0 input)
                pl.BlockSpec((None, B, Hp), lambda l: (l, 0, 0)),         # h[l]
                pl.BlockSpec((None, Kp, 3 * Hp), lambda l: (l, 0, 0)),    # W_ih^T[l]
                pl.BlockSpec((None, Hp, 3 * Hp), lambda l: (l, 0, 0)),    # W_hh^T[l]
                pl.BlockSpec((None, 1, 3 * Hp), lambda l: (l, 0, 0)),     # b_ih[l]
                pl.BlockSpec((None, 1, 3 * Hp), lambda l: (l, 0, 0)),     # b_hh[l]
            ],
            out_specs=pl.BlockSpec((None, B, Hp), lambda l: (l, 0, 0)),   # h_out[l]
            scratch_shapes=[pltpu.VMEM((B, Kp), jnp.float32)],            # carried activation
        ),
        compiler_params=pltpu.CompilerParams(
            dimension_semantics=("arbitrary",),   # layers are sequentially dependent
        ),
    )(x_p, h_p, packed["wih"], packed["whh"], packed["bih"], packed["bhh"])

    h_stack = out[:, :, :H]
    return h_stack[-1], h_stack


def _reference_forward(raw_params, x, h):
    """Pure-JAX reference mirroring PyTorch nn.GRUCell semantics."""
    H = h.shape[-1]
    h_list = []
    for i, p in enumerate(raw_params):
        gi = x @ p["w_ih"].T + p["b_ih"]
        gh = h[i] @ p["w_hh"].T + p["b_hh"]
        r = jax.nn.sigmoid(gi[:, :H] + gh[:, :H])
        z = jax.nn.sigmoid(gi[:, H:2 * H] + gh[:, H:2 * H])
        n = jnp.tanh(gi[:, 2 * H:] + r * gh[:, 2 * H:])
        h_i = (1.0 - z) * n + z * h[i]
        x = h_i                     # dropout identity in eval mode
        h_list.append(h_i)
    return h_list[-1], jnp.stack(h_list)


if __name__ == "__main__":
    num_layers = 2
    batch = 8
    input_size = 32
    rnn_size = 32

    key = jax.random.PRNGKey(0)
    key, kx, kh, kp = jax.random.split(key, 4)

    x = jax.random.normal(kx, (batch, input_size), jnp.float32)
    h0 = jax.random.normal(kh, (num_layers, batch, rnn_size), jnp.float32)

    raw_params = init_stacked_gru_params(kp, num_layers, input_size, rnn_size)
    packed = pack_stacked_gru_params(raw_params, input_size, rnn_size, dtype=jnp.float32)

    last_h, h_stack = stacked_gru_cell_forward(packed, x, h0)
    last_h = jax.block_until_ready(last_h)
    h_stack = jax.block_until_ready(h_stack)

    ref_last, ref_stack = _reference_forward(raw_params, x, h0)
    assert last_h.shape == (batch, rnn_size)
    assert h_stack.shape == (num_layers, batch, rnn_size)
    assert jnp.allclose(last_h, ref_last, atol=1e-5, rtol=1e-5)
    assert jnp.allclose(h_stack, ref_stack, atol=1e-5, rtol=1e-5)

    print("KERNEL_OK")
</pallas_src>

<mosaic_0001>
module attributes {stable_mosaic.version = 11 : i64} {
  func.func @_stacked_gru_kernel(%arg0: i32, %arg1: memref<8x128xf32, #tpu.memory_space<vmem>>, %arg2: memref<1x8x128xf32, #tpu.memory_space<vmem>>, %arg3: memref<1x128x384xf32, #tpu.memory_space<vmem>>, %arg4: memref<1x128x384xf32, #tpu.memory_space<vmem>>, %arg5: memref<1x1x384xf32, #tpu.memory_space<vmem>>, %arg6: memref<1x1x384xf32, #tpu.memory_space<vmem>>, %arg7: memref<1x8x128xf32, #tpu.memory_space<vmem>>, %arg8: memref<8x128xf32, #tpu.memory_space<vmem>>) attributes {dimension_semantics = [#tpu.dimension_semantics<arbitrary>], iteration_bounds = array<i64: 2>, scalar_prefetch = 0 : i64, scratch_operands = 1 : i64, tpu.core_type = #tpu.core_type<tc>, window_params = [{pipeline_mode = #tpu.pipeline_mode<synchronous>, transform_indices = @transform_0, window_bounds = array<i64: 8, 128>}, {transform_indices = @transform_1, window_bounds = array<i64: 1, 8, 128>}, {transform_indices = @transform_2, window_bounds = array<i64: 1, 128, 384>}, {transform_indices = @transform_3, window_bounds = array<i64: 1, 128, 384>}, {transform_indices = @transform_4, window_bounds = array<i64: 1, 1, 384>}, {transform_indices = @transform_5, window_bounds = array<i64: 1, 1, 384>}, {transform_indices = @transform_6, window_bounds = array<i64: 1, 8, 128>}]} {
    %c0_i32 = arith.constant 0 : i32
    %0 = arith.cmpi eq, %arg0, %c0_i32 : i32
    %1 = arith.extui %0 : i1 to i32
    %c0_i32_0 = arith.constant 0 : i32
    %2 = arith.cmpi ne, %1, %c0_i32_0 : i32
    scf.if %2 {
      %c0_26 = arith.constant 0 : index
      %c0_27 = arith.constant 0 : index
      %50 = vector.load %arg1[%c0_26, %c0_27] : memref<8x128xf32, #tpu.memory_space<vmem>>, vector<8x128xf32>
      %c0_28 = arith.constant 0 : index
      %c0_29 = arith.constant 0 : index
      %51 = vector.load %arg8[%c0_28, %c0_29] : memref<8x128xf32, #tpu.memory_space<vmem>>, vector<8x128xf32>
      tpu.vector_store %arg8[%c0_28, %c0_29], %50 {strides = array<i32>} : memref<8x128xf32, #tpu.memory_space<vmem>>, vector<8x128xf32>,
    } else {
    }
    %c0 = arith.constant 0 : index
    %c0_1 = arith.constant 0 : index
    %3 = vector.load %arg8[%c0, %c0_1] : memref<8x128xf32, #tpu.memory_space<vmem>>, vector<8x128xf32>
    %c0_2 = arith.constant 0 : index
    %c0_3 = arith.constant 0 : index
    %c0_4 = arith.constant 0 : index
    %4 = vector.load %arg2[%c0_2, %c0_3, %c0_4] : memref<1x8x128xf32, #tpu.memory_space<vmem>>, vector<1x8x128xf32>
    %5 = vector.shape_cast %4 : vector<1x8x128xf32> to vector<8x128xf32>
    %c0_5 = arith.constant 0 : index
    %c0_6 = arith.constant 0 : index
    %c0_7 = arith.constant 0 : index
    %6 = vector.load %arg3[%c0_5, %c0_6, %c0_7] : memref<1x128x384xf32, #tpu.memory_space<vmem>>, vector<1x128x384xf32>
    %7 = vector.shape_cast %6 : vector<1x128x384xf32> to vector<128x384xf32>
    %cst = arith.constant dense<0.000000e+00> : vector<8x384xf32>
    %8 = tpu.matmul %3, %7, %cst {dimension_numbers = #tpu.dot_dimension_numbers<[1], [0], [0], [1], [0, 0, 1, 1], [], []>} : vector<8x128xf32>, vector<128x384xf32>, vector<8x384xf32> -> vector<8x384xf32>
    %c0_8 = arith.constant 0 : index
    %c0_9 = arith.constant 0 : index
    %c0_10 = arith.constant 0 : index
    %9 = vector.load %arg5[%c0_8, %c0_9, %c0_10] : memref<1x1x384xf32, #tpu.memory_space<vmem>>, vector<1x1x384xf32>
    %10 = vector.shape_cast %9 : vector<1x1x384xf32> to vector<1x384xf32>
    %11 = vector.broadcast %10 : vector<1x384xf32> to vector<8x384xf32>
    %12 = arith.addf %8, %11 : vector<8x384xf32>
    %c0_11 = arith.constant 0 : index
    %c0_12 = arith.constant 0 : index
    %c0_13 = arith.constant 0 : index
    %13 = vector.load %arg4[%c0_11, %c0_12, %c0_13] : memref<1x128x384xf32, #tpu.memory_space<vmem>>, vector<1x128x384xf32>
    %14 = vector.shape_cast %13 : vector<1x128x384xf32> to vector<128x384xf32>
    %cst_14 = arith.constant dense<0.000000e+00> : vector<8x384xf32>
    %15 = tpu.matmul %5, %14, %cst_14 {dimension_numbers = #tpu.dot_dimension_numbers<[1], [0], [0], [1], [0, 0, 1, 1], [], []>} : vector<8x128xf32>, vector<128x384xf32>, vector<8x384xf32> -> vector<8x384xf32>
    %c0_15 = arith.constant 0 : index
    %c0_16 = arith.constant 0 : index
    %c0_17 = arith.constant 0 : index
    %16 = vector.load %arg6[%c0_15, %c0_16, %c0_17] : memref<1x1x384xf32, #tpu.memory_space<vmem>>, vector<1x1x384xf32>
    %17 = vector.shape_cast %16 : vector<1x1x384xf32> to vector<1x384xf32>
    %18 = vector.broadcast %17 : vector<1x384xf32> to vector<8x384xf32>
    %19 = arith.addf %15, %18 : vector<8x384xf32>
    %20 = vector.extract_strided_slice %12 {offsets = [0, 0], sizes = [8, 128], strides = [1, 1]} : vector<8x384xf32> to vector<8x128xf32>
    %21 = vector.extract_strided_slice %12 {offsets = [0, 128], sizes = [8, 128], strides = [1, 1]} : vector<8x384xf32> to vector<8x128xf32>
    %22 = vector.extract_strided_slice %12 {offsets = [0, 256], sizes = [8, 128], strides = [1, 1]} : vector<8x384xf32> to vector<8x128xf32>
    %23 = vector.extract_strided_slice %19 {offsets = [0, 0], sizes = [8, 128], strides = [1, 1]} : vector<8x384xf32> to vector<8x128xf32>
    %24 = vector.extract_strided_slice %19 {offsets = [0, 128], sizes = [8, 128], strides = [1, 1]} : vector<8x384xf32> to vector<8x128xf32>
    %25 = vector.extract_strided_slice %19 {offsets = [0, 256], sizes = [8, 128], strides = [1, 1]} : vector<8x384xf32> to vector<8x128xf32>
    %26 = arith.addf %20, %23 : vector<8x128xf32>
    %27 = arith.negf %26 : vector<8x128xf32>
    %28 = math.exp %27 : vector<8x128xf32>
    %cst_18 = arith.constant 1.000000e+00 : f32
    %29 = vector.broadcast %cst_18 : f32 to vector<8x128xf32>
    %30 = arith.addf %29, %28 : vector<8x128xf32>
    %31 = arith.divf %29, %30 : vector<8x128xf32>
    %32 = arith.addf %21, %24 : vector<8x128xf32>
    %33 = arith.negf %32 : vector<8x128xf32>
    %34 = math.exp %33 : vector<8x128xf32>
    %cst_19 = arith.constant 1.000000e+00 : f32
    %35 = vector.broadcast %cst_19 : f32 to vector<8x128xf32>
    %36 = arith.addf %35, %34 : vector<8x128xf32>
    %37 = arith.divf %35, %36 : vector<8x128xf32>
    %38 = arith.mulf %31, %25 : vector<8x128xf32>
    %39 = arith.addf %22, %38 : vector<8x128xf32>
    %40 = math.tanh %39 : vector<8x128xf32>
    %cst_20 = arith.constant 1.000000e+00 : f32
    %41 = vector.broadcast %cst_20 : f32 to vector<8x128xf32>
    %42 = arith.subf %41, %37 : vector<8x128xf32>
    %43 = arith.mulf %42, %40 : vector<8x128xf32>
    %44 = arith.mulf %37, %5 : vector<8x128xf32>
    %45 = arith.addf %43, %44 : vector<8x128xf32>
    %c0_21 = arith.constant 0 : index
    %c0_22 = arith.constant 0 : index
    %c0_23 = arith.constant 0 : index
    %46 = vector.load %arg7[%c0_21, %c0_22, %c0_23] : memref<1x8x128xf32, #tpu.memory_space<vmem>>, vector<1x8x128xf32>
    %47 = vector.shape_cast %46 : vector<1x8x128xf32> to vector<8x128xf32>
    %48 = vector.shape_cast %45 : vector<8x128xf32> to vector<1x8x128xf32>
    tpu.vector_store %arg7[%c0_21, %c0_22, %c0_23], %48 {strides = array<i32>} : memref<1x8x128xf32, #tpu.memory_space<vmem>>, vector<1x8x128xf32>,
    %c0_24 = arith.constant 0 : index
    %c0_25 = arith.constant 0 : index
    %49 = vector.load %arg8[%c0_24, %c0_25] : memref<8x128xf32, #tpu.memory_space<vmem>>, vector<8x128xf32>
    tpu.vector_store %arg8[%c0_24, %c0_25], %45 {strides = array<i32>} : memref<8x128xf32, #tpu.memory_space<vmem>>, vector<8x128xf32>,
    return
  }
  func.func @transform_0(%arg0: i32) -> (i32, i32) {
    %c0_i32 = arith.constant 0 : i32
    %c0_i32_0 = arith.constant 0 : i32
    %c0_i32_1 = arith.constant 0 : i32
    return %c0_i32, %c0_i32_0 : i32, i32
  }
  func.func @transform_1(%arg0: i32) -> (i32, i32, i32) {
    %c0_i32 = arith.constant 0 : i32
    %c0_i32_0 = arith.constant 0 : i32
    %c0_i32_1 = arith.constant 0 : i32
    return %arg0, %c0_i32, %c0_i32_0 : i32, i32, i32
  }
  func.func @transform_2(%arg0: i32) -> (i32, i32, i32) {
    %c0_i32 = arith.constant 0 : i32
    %c0_i32_0 = arith.constant 0 : i32
    %c0_i32_1 = arith.constant 0 : i32
    return %arg0, %c0_i32, %c0_i32_0 : i32, i32, i32
  }
  func.func @transform_3(%arg0: i32) -> (i32, i32, i32) {
    %c0_i32 = arith.constant 0 : i32
    %c0_i32_0 = arith.constant 0 : i32
    %c0_i32_1 = arith.constant 0 : i32
    return %arg0, %c0_i32, %c0_i32_0 : i32, i32, i32
  }
  func.func @transform_4(%arg0: i32) -> (i32, i32, i32) {
    %c0_i32 = arith.constant 0 : i32
    %c0_i32_0 = arith.constant 0 : i32
    %c0_i32_1 = arith.constant 0 : i32
    return %arg0, %c0_i32, %c0_i32_0 : i32, i32, i32
  }
  func.func @transform_5(%arg0: i32) -> (i32, i32, i32) {
    %c0_i32 = arith.constant 0 : i32
    %c0_i32_0 = arith.constant 0 : i32
    %c0_i32_1 = arith.constant 0 : i32
    return %arg0, %c0_i32, %c0_i32_0 : i32, i32, i32
  }
  func.func @transform_6(%arg0: i32) -> (i32, i32, i32) {
    %c0_i32 = arith.constant 0 : i32
    %c0_i32_0 = arith.constant 0 : i32
    %c0_i32_1 = arith.constant 0 : i32
    return %arg0, %c0_i32, %c0_i32_0 : i32, i32, i32
  }
}

</mosaic_0001>

<llo_original>
// kernel: tpu_custom_call.1
$region0: #{tpu_custom_call.1}
  #allocation0 [shape = 'u32[]', space=smem, size = 0x4, offset = 0x4, fixed_abs, tag = 'smem constant byte address 0x4 - core index']
  #allocation1 [shape = 'u32[72,128]{1,0:T(1,128)}', space=vmem, size = 0x9000, scoped, tag = 'internal scratch']
  #allocation2 [shape = 'f32[8,128]{1,0:T(8,128)}', space=vmem, size = 0x1000, scoped, tag = 'scratch operand']
  %s0 = inlined_call_operand.hbm [shape: f32[8,128], index: 0, kind: input, shape index: {}]
  %s1 = inlined_call_operand.hbm [shape: f32[2,8,128], index: 1, kind: input, shape index: {}]
  %s2 = inlined_call_operand.hbm [shape: f32[2,128,384], index: 2, kind: input, shape index: {}]
  %s3 = inlined_call_operand.hbm [shape: f32[2,128,384], index: 3, kind: input, shape index: {}]
  %s4 = inlined_call_operand.hbm [shape: f32[2,1,384], index: 4, kind: input, shape index: {}]
  %s5 = inlined_call_operand.hbm [shape: f32[2,1,384], index: 5, kind: input, shape index: {}]
  %s6 = inlined_call_operand.hbm [shape: f32[2,8,128], index: 6, kind: output, shape index: {}]
  %s7 = sld [smem:[#allocation0]]
  $region85: #{tpu_custom_call.1} parent=0
    _
  %s9 = ssub.s32 1, %s7
  %s10 = scalar_select 0, %s9, %s7
  $region1: #{tpu_custom_call.1} parent=0
    #allocation3 [shape = 'u8[4096]{0}', space=vmem, size = 0x1000, scoped, tag = 'input window, operand 0, single buffered']
    #allocation4 [shape = 's32[2]{0}', space=sflag, size = 0x8, scoped, tag = 'scoped memory for tpu_custom_call.1']
    #allocation5 [shape = 's32[2]{0}', space=sflag, size = 0x8, scoped, tag = 'scoped memory for tpu_custom_call.1']
    #allocation6 [shape = 'u8[8192]{0}', space=vmem, size = 0x2000, scoped, tag = 'input window, operand 1']
    #allocation7 [shape = 's32[2]{0}', space=sflag, size = 0x8, scoped, tag = 'scoped memory for tpu_custom_call.1']
    #allocation8 [shape = 'u8[393216]{0}', space=vmem, size = 0x60000, scoped, tag = 'input window, operand 2']
    #allocation9 [shape = 'u8[393216]{0}', space=vmem, size = 0x60000, scoped, tag = 'input window, operand 3']
    #allocation10 [shape = 's32[2]{0}', space=sflag, size = 0x8, scoped, tag = 'scoped memory for tpu_custom_call.1']
    #allocation11 [shape = 'u8[3072]{0}', space=vmem, size = 0xc00, scoped, tag = 'input window, operand 4']
    #allocation12 [shape = 'u8[3072]{0}', space=vmem, size = 0xc00, scoped, tag = 'input window, operand 5']
    #allocation13 [shape = 's32[2]{0}', space=sflag, size = 0x8, scoped, tag = 'scoped memory for tpu_custom_call.1']
    #allocation14 [shape = 'u8[8192]{0}', space=vmem, size = 0x2000, scoped, tag = 'output window, operand 0']
    %11 = vsyncpa [#allocation4], 0
    %12 = vsyncpa [#allocation7], 0
    %s13 = scalar_lea.sflag [#allocation7], 1
    %14 = vsyncpa %s13, 0
    %15 = vsyncpa [#allocation10], 0
    %s16 = scalar_lea.sflag [#allocation10], 1
    %17 = vsyncpa %s16, 0
    %18 = vsyncpa [#allocation13], 0
    %s19 = scalar_lea.sflag [#allocation13], 1
    %20 = vsyncpa %s19, 0
    %21 = vsyncpa [#allocation5], 0
    %s22 = scalar_lea.sflag [#allocation5], 1
    %23 = vsyncpa %s22, 0
    loop: start=0, step=1, limit=4
    $region2: #{tpu_custom_call.1} parent=1 // loop_pre_header
      _
    $region3: #{tpu_custom_call.1} parent=1 // loop_header
      %s25 = sphi 0, %s29
      %p26 = scmp.ge.s32.totalorder %s25, 4
      %s33 = sphi 0, %s33
      %s35 = sphi 0, %s33
      %s36 = sphi 0, %s35
      %s50 = sphi 0, %s36
      %s56 = sphi 0, %s58
      %s59 = sphi 0, %s56
      %s60 = sphi 0, %s59
      %s76 = sphi 0, %s60
      %s82 = sphi 0, %s84
      %s85 = sphi 0, %s82
      %s86 = sphi 0, %s85
      %s102 = sphi 0, %s86
      %s108 = sphi 0, %s110
      %s111 = sphi 0, %s108
      %s112 = sphi 0, %s111
      %s128 = sphi 0, %s112
      %s134 = sphi 0, %s136
      %s137 = sphi 0, %s134
      %s138 = sphi 0, %s137
      %s154 = sphi 0, %s138
      %s160 = sphi 0, %s162
      %s163 = sphi 0, %s160
      %s164 = sphi 0, %s163
      %s180 = sphi 0, %s164
      %s186 = sphi 0, %s188
      %s189 = sphi 0, %s186
      %s190 = sphi 0, %s189
      %s206 = sphi 0, %s190
    $region4: #{tpu_custom_call.1} parent=1 // loop_header_branch
      %28 = sbr.rel (%p26) target = $region8
    $region5: #{tpu_custom_call.1} parent=1 // loop_body
      %s30 = ssub.s32 %s25, 1
      %s31 = ssub.s32 %s25, 2
      %s32 = sadd.s32 %s25, 1
      %s34 = sadd.s32 %s33, 1
      %p37 = scmp.eq.s32.totalorder %s25, 1
      %p38 = scmp.ne.s32.totalorder %s33, %s35
      %p39 = scmp.eq.s32.totalorder %s25, 0
      %p40 = por %p38, %p39
      %p41 = scmp.ne.s32.totalorder %s33, %s35
      %p42 = scmp.eq.s32.totalorder %s30, 1
      %p43 = por %p41, %p42
      %p44 = scmp.ne.s32.totalorder %s35, %s36
      %p45 = scmp.eq.s32.totalorder %s30, 0
      %p46 = por %p44, %p45
      %p47 = scmp.ne.s32.totalorder %s35, %s36
      %p48 = scmp.eq.s32.totalorder %s31, 1
      %p49 = por %p47, %p48
      %p51 = scmp.ne.s32.totalorder %s36, %s50
      %p52 = scmp.eq.s32.totalorder %s31, 0
      %p53 = por %p51, %p52
      %s54 = ssub.s32 %s25, %s32
      %p55 = scmp.eq.s32.totalorder %s54, 0
      %s57 = sadd.s32 %s56, 1
      %s58 = scalar_select %p55, %s56, %s57
      %p61 = pneg %p55
      %p62 = scmp.eq.s32.totalorder %s25, 1
      %p63 = por %p61, %p62
      %p64 = scmp.ne.s32.totalorder %s56, %s59
      %p65 = scmp.eq.s32.totalorder %s25, 0
      %p66 = por %p64, %p65
      %p67 = scmp.ne.s32.totalorder %s56, %s59
      %p68 = scmp.eq.s32.totalorder %s30, 1
      %p69 = por %p67, %p68
      %p70 = scmp.ne.s32.totalorder %s59, %s60
      %p71 = scmp.eq.s32.totalorder %s30, 0
      %p72 = por %p70, %p71
      %p73 = scmp.ne.s32.totalorder %s59, %s60
      %p74 = scmp.eq.s32.totalorder %s31, 1
      %p75 = por %p73, %p74
      %p77 = scmp.ne.s32.totalorder %s60, %s76
      %p78 = scmp.eq.s32.totalorder %s31, 0
      %p79 = por %p77, %p78
      %s80 = ssub.s32 %s25, %s32
      %p81 = scmp.eq.s32.totalorder %s80, 0
      %s83 = sadd.s32 %s82, 1
      %s84 = scalar_select %p81, %s82, %s83
      %p87 = pneg %p81
      %p88 = scmp.eq.s32.totalorder %s25, 1
      %p89 = por %p87, %p88
      %p90 = scmp.ne.s32.totalorder %s82, %s85
      %p91 = scmp.eq.s32.totalorder %s25, 0
      %p92 = por %p90, %p91
      %p93 = scmp.ne.s32.totalorder %s82, %s85
      %p94 = scmp.eq.s32.totalorder %s30, 1
      %p95 = por %p93, %p94
      %p96 = scmp.ne.s32.totalorder %s85, %s86
      %p97 = scmp.eq.s32.totalorder %s30, 0
      %p98 = por %p96, %p97
      %p99 = scmp.ne.s32.totalorder %s85, %s86
      %p100 = scmp.eq.s32.totalorder %s31, 1
      %p101 = por %p99, %p100
      %p103 = scmp.ne.s32.totalorder %s86, %s102
      %p104 = scmp.eq.s32.totalorder %s31, 0
      %p105 = por %p103, %p104
      %s106 = ssub.s32 %s25, %s32
      %p107 = scmp.eq.s32.totalorder %s106, 0
      %s109 = sadd.s32 %s108, 1
      %s110 = scalar_select %p107, %s108, %s109
      %p113 = pneg %p107
      %p114 = scmp.eq.s32.totalorder %s25, 1
      %p115 = por %p113, %p114
      %p116 = scmp.ne.s32.totalorder %s108, %s111
      %p117 = scmp.eq.s32.totalorder %s25, 0
      %p118 = por %p116, %p117
      %p119 = scmp.ne.s32.totalorder %s108, %s111
      %p120 = scmp.eq.s32.totalorder %s30, 1
      %p121 = por %p119, %p120
      %p122 = scmp.ne.s32.totalorder %s111, %s112
      %p123 = scmp.eq.s32.totalorder %s30, 0
      %p124 = por %p122, %p123
      %p125 = scmp.ne.s32.totalorder %s111, %s112
      %p126 = scmp.eq.s32.totalorder %s31, 1
      %p127 = por %p125, %p126
      %p129 = scmp.ne.s32.totalorder %s112, %s128
      %p130 = scmp.eq.s32.totalorder %s31, 0
      %p131 = por %p129, %p130
      %s132 = ssub.s32 %s25, %s32
      %p133 = scmp.eq.s32.totalorder %s132, 0
      %s135 = sadd.s32 %s134, 1
      %s136 = scalar_select %p133, %s134, %s135
      %p139 = pneg %p133
      %p140 = scmp.eq.s32.totalorder %s25, 1
      %p141 = por %p139, %p140
      %p142 = scmp.ne.s32.totalorder %s134, %s137
      %p143 = scmp.eq.s32.totalorder %s25, 0
      %p144 = por %p142, %p143
      %p145 = scmp.ne.s32.totalorder %s134, %s137
      %p146 = scmp.eq.s32.totalorder %s30, 1
      %p147 = por %p145, %p146
      %p148 = scmp.ne.s32.totalorder %s137, %s138
      %p149 = scmp.eq.s32.totalorder %s30, 0
      %p150 = por %p148, %p149
      %p151 = scmp.ne.s32.totalorder %s137, %s138
      %p152 = scmp.eq.s32.totalorder %s31, 1
      %p153 = por %p151, %p152
      %p155 = scmp.ne.s32.totalorder %s138, %s154
      %p156 = scmp.eq.s32.totalorder %s31, 0
      %p157 = por %p155, %p156
      %s158 = ssub.s32 %s25, %s32
      %p159 = scmp.eq.s32.totalorder %s158, 0
      %s161 = sadd.s32 %s160, 1
      %s162 = scalar_select %p159, %s160, %s161
      %p165 = pneg %p159
      %p166 = scmp.eq.s32.totalorder %s25, 1
      %p167 = por %p165, %p166
      %p168 = scmp.ne.s32.totalorder %s160, %s163
      %p169 = scmp.eq.s32.totalorder %s25, 0
      %p170 = por %p168, %p169
      %p171 = scmp.ne.s32.totalorder %s160, %s163
      %p172 = scmp.eq.s32.totalorder %s30, 1
      %p173 = por %p171, %p172
      %p174 = scmp.ne.s32.totalorder %s163, %s164
      %p175 = scmp.eq.s32.totalorder %s30, 0
      %p176 = por %p174, %p175
      %p177 = scmp.ne.s32.totalorder %s163, %s164
      %p178 = scmp.eq.s32.totalorder %s31, 1
      %p179 = por %p177, %p178
      %p181 = scmp.ne.s32.totalorder %s164, %s180
      %p182 = scmp.eq.s32.totalorder %s31, 0
      %p183 = por %p181, %p182
      %s184 = ssub.s32 %s25, %s32
      %p185 = scmp.eq.s32.totalorder %s184, 0
      %s187 = sadd.s32 %s186, 1
      %s188 = scalar_select %p185, %s186, %s187
      %p191 = pneg %p185
      %p192 = scmp.eq.s32.totalorder %s25, 1
      %p193 = por %p191, %p192
      %p194 = scmp.ne.s32.totalorder %s186, %s189
      %p195 = scmp.eq.s32.totalorder %s25, 0
      %p196 = por %p194, %p195
      %p197 = scmp.ne.s32.totalorder %s186, %s189
      %p198 = scmp.eq.s32.totalorder %s30, 1
      %p199 = por %p197, %p198
      %p200 = scmp.ne.s32.totalorder %s189, %s190
      %p201 = scmp.eq.s32.totalorder %s30, 0
      %p202 = por %p200, %p201
      %p203 = scmp.ne.s32.totalorder %s189, %s190
      %p204 = scmp.eq.s32.totalorder %s31, 1
      %p205 = por %p203, %p204
      %p207 = scmp.ne.s32.totalorder %s190, %s206
      %p208 = scmp.eq.s32.totalorder %s31, 0
      %p209 = por %p207, %p208
      %p210 = scmp.le.s32.totalorder 1, %s25
      %p211 = scmp.lt.s32.totalorder %s25, 3
      %p212 = pnand %p210, %p211
      %p213 = pneg %p212
      // Predicated region
      $region9: #{tpu_custom_call.1} parent=5 // pred_check
        _
      $region10: #{tpu_custom_call.1} parent=5 // pred_check_branch
        %215 = sbr.rel (%p212) target = $region12
      $region11: #{tpu_custom_call.1} parent=5 // pred_region
        %s216 = ssub.s32 %s25, 1
        // Predicated region
        $region13: #{tpu_custom_call.1} parent=11 // pred_check
          %p217 = pneg %p46
        $region14: #{tpu_custom_call.1} parent=11 // pred_check_branch
          %219 = sbr.rel (%p217) target = $region16
        $region15: #{tpu_custom_call.1} parent=11 // pred_region
          %221 = vsyncadd [#allocation4], 0
          %s223 = sshll.u32 %s0, 4
          %s224 = int_to_ptr.hbm [resolvable:$true] %s223
          %s225 = sshll.u32 [#allocation3], 4
          %s226 = int_to_ptr.vmem [resolvable:$true] %s225
          %228 = dma.hbm_to_vmem [thread:$0]  %s224, 128, %s226, [#allocation4]
        $region16: #{tpu_custom_call.1} parent=11 // pred_fallthru
          _
      $region12: #{tpu_custom_call.1} parent=5 // pred_fallthru
        _
      %p229 = scmp.lt.s32.totalorder %s25, 2
      // Predicated region
      $region17: #{tpu_custom_call.1} parent=5 // pred_check
        %p230 = pneg %p229
      $region18: #{tpu_custom_call.1} parent=5 // pred_check_branch
        %232 = sbr.rel (%p230) target = $region20
      $region19: #{tpu_custom_call.1} parent=5 // pred_region
        // Predicated region
        $region21: #{tpu_custom_call.1} parent=19 // pred_check
          %p233 = pneg %p66
        $region22: #{tpu_custom_call.1} parent=19 // pred_check_branch
          %235 = sbr.rel (%p233) target = $region24
        $region23: #{tpu_custom_call.1} parent=19 // pred_region
          %s236 = sand.u32 %s25, 1
          %s237 = scalar_lea.sflag [#allocation7], %s236
          %s238 = sand.u32 %s56, 1
          %s239 = smul.addr %s238, 8
          %s240 = scalar_lea.vmem [#allocation6], %s239
          %242 = vsyncadd %s237, 0
          %s243 = smul.addr %s25, 8
          %s244 = scalar_lea.hbm %s1, %s243
          %s246 = sshll.u32 %s244, 4
          %s247 = int_to_ptr.hbm [resolvable:$true] %s246
          %s248 = sshll.u32 %s240, 4
          %s249 = int_to_ptr.vmem [resolvable:$true] %s248
          %251 = dma.hbm_to_vmem [thread:$0]  %s247, 128, %s249, %s237
        $region24: #{tpu_custom_call.1} parent=19 // pred_fallthru
          _
        // Predicated region
        $region25: #{tpu_custom_call.1} parent=19 // pred_check
          %p252 = pneg %p92
        $region26: #{tpu_custom_call.1} parent=19 // pred_check_branch
          %254 = sbr.rel (%p252) target = $region28
        $region27: #{tpu_custom_call.1} parent=19 // pred_region
          %s255 = sand.u32 %s25, 1
          %s256 = scalar_lea.sflag [#allocation7], %s255
          %s257 = sand.u32 %s82, 1
          %s258 = smul.addr %s257, 384
          %s259 = scalar_lea.vmem [#allocation8], %s258
          %261 = vsyncadd %s256, 0
          %s262 = smul.addr %s25, 48
          %s263 = smul.addr %s262, 8
          %s264 = scalar_lea.hbm %s2, %s263
          %s265 = sshll.u32 %s264, 4
          %s266 = int_to_ptr.hbm [resolvable:$true] %s265
          %s267 = sshll.u32 %s259, 4
          %s268 = int_to_ptr.vmem [resolvable:$true] %s267
          %273 = dma.hbm_to_vmem [thread:$0]  %s266, 6144, %s268, %s256, 384, 384, 24
        $region28: #{tpu_custom_call.1} parent=19 // pred_fallthru
          _
        // Predicated region
        $region29: #{tpu_custom_call.1} parent=19 // pred_check
          %p274 = pneg %p118
        $region30: #{tpu_custom_call.1} parent=19 // pred_check_branch
          %276 = sbr.rel (%p274) target = $region32
        $region31: #{tpu_custom_call.1} parent=19 // pred_region
          %s277 = sand.u32 %s25, 1
          %s278 = scalar_lea.sflag [#allocation10], %s277
          %s279 = sand.u32 %s108, 1
          %s280 = smul.addr %s279, 384
          %s281 = scalar_lea.vmem [#allocation9], %s280
          %283 = vsyncadd %s278, 0
          %s284 = smul.addr %s25, 48
          %s285 = smul.addr %s284, 8
          %s286 = scalar_lea.hbm %s3, %s285
          %s287 = sshll.u32 %s286, 4
          %s288 = int_to_ptr.hbm [resolvable:$true] %s287
          %s289 = sshll.u32 %s281, 4
          %s290 = int_to_ptr.vmem [resolvable:$true] %s289
          %295 = dma.hbm_to_vmem [thread:$0]  %s288, 6144, %s290, %s278, 384, 384, 24
        $region32: #{tpu_custom_call.1} parent=19 // pred_fallthru
          _
        // Predicated region
        $region33: #{tpu_custom_call.1} parent=19 // pred_check
          %p296 = pneg %p144
        $region34: #{tpu_custom_call.1} parent=19 // pred_check_branch
          %298 = sbr.rel (%p296) target = $region36
        $region35: #{tpu_custom_call.1} parent=19 // pred_region
          %s299 = sand.u32 %s25, 1
          %s300 = scalar_lea.sflag [#allocation10], %s299
          %s301 = sand.u32 %s134, 1
          %s302 = smul.addr %s301, 3
          %s303 = scalar_lea.vmem [#allocation11], %s302
          %305 = vsyncadd %s300, 0
          %s306 = smul.addr %s25, 3
          %s307 = scalar_lea.hbm %s4, %s306
          %s309 = sshll.u32 %s307, 4
          %s310 = int_to_ptr.hbm [resolvable:$true] %s309
          %s311 = sshll.u32 %s303, 4
          %s312 = int_to_ptr.vmem [resolvable:$true] %s311
          %314 = dma.hbm_to_vmem [thread:$0]  %s310, 48, %s312, %s300
        $region36: #{tpu_custom_call.1} parent=19 // pred_fallthru
          _
        // Predicated region
        $region37: #{tpu_custom_call.1} parent=19 // pred_check
          %p315 = pneg %p170
        $region38: #{tpu_custom_call.1} parent=19 // pred_check_branch
          %317 = sbr.rel (%p315) target = $region40
        $region39: #{tpu_custom_call.1} parent=19 // pred_region
          %s318 = sand.u32 %s160, 1
          %s319 = scalar_lea.sflag [#allocation13], %s318
          %s320 = sand.u32 %s160, 1
          %s321 = smul.addr %s320, 3
          %s322 = scalar_lea.vmem [#allocation12], %s321
          %324 = vsyncadd %s319, 0
          %s325 = smul.addr %s25, 3
          %s326 = scalar_lea.hbm %s5, %s325
          %s328 = sshll.u32 %s326, 4
          %s329 = int_to_ptr.hbm [resolvable:$true] %s328
          %s330 = sshll.u32 %s322, 4
          %s331 = int_to_ptr.vmem [resolvable:$true] %s330
          %333 = dma.hbm_to_vmem [thread:$0]  %s329, 48, %s331, %s319
        $region40: #{tpu_custom_call.1} parent=19 // pred_fallthru
          _
      $region20: #{tpu_custom_call.1} parent=5 // pred_fallthru
        _
      %p334 = scmp.le.s32.totalorder 1, %s25
      %p335 = scmp.lt.s32.totalorder %s25, 3
      %p336 = pnand %p334, %p335
      %p337 = pneg %p336
      // Predicated region
      $region41: #{tpu_custom_call.1} parent=5 // pred_check
        _
      $region42: #{tpu_custom_call.1} parent=5 // pred_check_branch
        %339 = sbr.rel (%p336) target = $region44
      $region43: #{tpu_custom_call.1} parent=5 // pred_region
        %s340 = ssub.s32 %s25, 1
        // Predicated region
        $region45: #{tpu_custom_call.1} parent=43 // pred_check
          %p341 = pneg %p46
        $region46: #{tpu_custom_call.1} parent=43 // pred_check_branch
          %343 = sbr.rel (%p341) target = $region48
        $region47: #{tpu_custom_call.1} parent=43 // pred_region
          %345 = dma.done [#allocation4], 128
        $region48: #{tpu_custom_call.1} parent=43 // pred_fallthru
          _
        %s346 = sand.u32 %s30, 1
        %s347 = scalar_lea.sflag [#allocation7], %s346
        %s348 = sand.u32 %s59, 1
        %s349 = smul.addr %s348, 8
        %s350 = scalar_lea.vmem [#allocation6], %s349
        // Predicated region
        $region49: #{tpu_custom_call.1} parent=43 // pred_check
          %p351 = pneg %p72
        $region50: #{tpu_custom_call.1} parent=43 // pred_check_branch
          %353 = sbr.rel (%p351) target = $region52
        $region51: #{tpu_custom_call.1} parent=43 // pred_region
          %355 = dma.done %s347, 128
        $region52: #{tpu_custom_call.1} parent=43 // pred_fallthru
          _
        %s356 = sand.u32 %s30, 1
        %s357 = scalar_lea.sflag [#allocation7], %s356
        %s358 = sand.u32 %s85, 1
        %s359 = smul.addr %s358, 384
        %s360 = scalar_lea.vmem [#allocation8], %s359
        // Predicated region
        $region53: #{tpu_custom_call.1} parent=43 // pred_check
          %p361 = pneg %p98
        $region54: #{tpu_custom_call.1} parent=43 // pred_check_branch
          %363 = sbr.rel (%p361) target = $region56
        $region55: #{tpu_custom_call.1} parent=43 // pred_region
          %365 = dma.done %s357, 6144
        $region56: #{tpu_custom_call.1} parent=43 // pred_fallthru
          _
        %s366 = sand.u32 %s30, 1
        %s367 = scalar_lea.sflag [#allocation10], %s366
        %s368 = sand.u32 %s111, 1
        %s369 = smul.addr %s368, 384
        %s370 = scalar_lea.vmem [#allocation9], %s369
        // Predicated region
        $region57: #{tpu_custom_call.1} parent=43 // pred_check
          %p371 = pneg %p124
        $region58: #{tpu_custom_call.1} parent=43 // pred_check_branch
          %373 = sbr.rel (%p371) target = $region60
        $region59: #{tpu_custom_call.1} parent=43 // pred_region
          %375 = dma.done %s367, 6144
        $region60: #{tpu_custom_call.1} parent=43 // pred_fallthru
          _
        %s376 = sand.u32 %s30, 1
        %s377 = scalar_lea.sflag [#allocation10], %s376
        %s378 = sand.u32 %s137, 1
        %s379 = smul.addr %s378, 3
        %s380 = scalar_lea.vmem [#allocation11], %s379
        // Predicated region
        $region61: #{tpu_custom_call.1} parent=43 // pred_check
          %p381 = pneg %p150
        $region62: #{tpu_custom_call.1} parent=43 // pred_check_branch
          %383 = sbr.rel (%p381) target = $region64
        $region63: #{tpu_custom_call.1} parent=43 // pred_region
          %385 = dma.done %s377, 48
        $region64: #{tpu_custom_call.1} parent=43 // pred_fallthru
          _
        %s386 = sand.u32 %s163, 1
        %s387 = scalar_lea.sflag [#allocation13], %s386
        %s388 = sand.u32 %s163, 1
        %s389 = smul.addr %s388, 3
        %s390 = scalar_lea.vmem [#allocation12], %s389
        // Predicated region
        $region65: #{tpu_custom_call.1} parent=43 // pred_check
          %p391 = pneg %p176
        $region66: #{tpu_custom_call.1} parent=43 // pred_check_branch
          %393 = sbr.rel (%p391) target = $region68
        $region67: #{tpu_custom_call.1} parent=43 // pred_region
          %395 = dma.done %s387, 48
        $region68: #{tpu_custom_call.1} parent=43 // pred_fallthru
          _
        %p396 = pneg %p46
        %p397 = pneg %p43
        %s398 = sand.u32 %s30, 1
        %s399 = scalar_lea.sflag [#allocation7], %s398
        %s400 = sand.u32 %s59, 1
        %s401 = smul.addr %s400, 8
        %s402 = scalar_lea.vmem [#allocation6], %s401
        %p403 = pneg %p72
        %p404 = pneg %p69
        %s405 = sand.u32 %s30, 1
        %s406 = scalar_lea.sflag [#allocation7], %s405
        %s407 = sand.u32 %s85, 1
        %s408 = smul.addr %s407, 384
        %s409 = scalar_lea.vmem [#allocation8], %s408
        %p410 = pneg %p98
        %p411 = pneg %p95
        %s412 = sand.u32 %s30, 1
        %s413 = scalar_lea.sflag [#allocation10], %s412
        %s414 = sand.u32 %s111, 1
        %s415 = smul.addr %s414, 384
        %s416 = scalar_lea.vmem [#allocation9], %s415
        %p417 = pneg %p124
        %p418 = pneg %p121
        %s419 = sand.u32 %s30, 1
        %s420 = scalar_lea.sflag [#allocation10], %s419
        %s421 = sand.u32 %s137, 1
        %s422 = smul.addr %s421, 3
        %s423 = scalar_lea.vmem [#allocation11], %s422
        %p424 = pneg %p150
        %p425 = pneg %p147
        %s426 = sand.u32 %s163, 1
        %s427 = scalar_lea.sflag [#allocation13], %s426
        %s428 = sand.u32 %s163, 1
        %s429 = smul.addr %s428, 3
        %s430 = scalar_lea.vmem [#allocation12], %s429
        %p431 = pneg %p176
        %p432 = pneg %p173
        %p433 = pneg %p202
        %p434 = pneg %p199
        %s435 = sand.u32 %s189, 1
        %s436 = scalar_lea.sflag [#allocation5], %s435
        %s437 = sand.u32 %s189, 1
        %s438 = smul.addr %s437, 8
        %s439 = scalar_lea.vmem [#allocation14], %s438
        %p440 = scmp.eq.s32.totalorder %s30, 0
        // Predicated region
        $region69: #{tpu_custom_call.1} parent=43 // pred_check
          %p441 = pneg %p440
        $region70: #{tpu_custom_call.1} parent=43 // pred_check_branch
          %443 = sbr.rel (%p441) target = $region72
        $region71: #{tpu_custom_call.1} parent=43 // pred_region
          %v444 = vld [vmem:[#allocation3] sm:$0xff]
          %445 = vst [vmem:[#allocation2] sm:$0xff] %v444
        $region72: #{tpu_custom_call.1} parent=43 // pred_fallthru
          _
        %v446 = vld [vmem:[#allocation2] sm:$0xff]
        %v447 = vld [vmem:[%s350] sm:$0xff]
        %v448 = vld [vmem:[%s360] sm:$0xff]
        %v449 = vld [vmem:[%s360 + $0x8] sm:$0xff]
        %v450 = vld [vmem:[%s360 + $0x10] sm:$0xff]
        %v451 = vld [vmem:[%s360 + $0x18] sm:$0xff]
        %v452 = vld [vmem:[%s360 + $0x20] sm:$0xff]
        %v453 = vld [vmem:[%s360 + $0x28] sm:$0xff]
        %v454 = vld [vmem:[%s360 + $0x30] sm:$0xff]
        %v455 = vld [vmem:[%s360 + $0x38] sm:$0xff]
        %v456 = vld [vmem:[%s360 + $0x40] sm:$0xff]
        %v457 = vld [vmem:[%s360 + $0x48] sm:$0xff]
        %v458 = vld [vmem:[%s360 + $0x50] sm:$0xff]
        %v459 = vld [vmem:[%s360 + $0x58] sm:$0xff]
        %v460 = vld [vmem:[%s360 + $0x60] sm:$0xff]
        %v461 = vld [vmem:[%s360 + $0x68] sm:$0xff]
        %v462 = vld [vmem:[%s360 + $0x70] sm:$0xff]
        %v463 = vld [vmem:[%s360 + $0x78] sm:$0xff]
        %v464 = vld [vmem:[%s360 + $0x80] sm:$0xff]
        %v465 = vld [vmem:[%s360 + $0x88] sm:$0xff]
        %v466 = vld [vmem:[%s360 + $0x90] sm:$0xff]
        %v467 = vld [vmem:[%s360 + $0x98] sm:$0xff]
        %v468 = vld [vmem:[%s360 + $0xa0] sm:$0xff]
        %v469 = vld [vmem:[%s360 + $0xa8] sm:$0xff]
        %v470 = vld [vmem:[%s360 + $0xb0] sm:$0xff]
        %v471 = vld [vmem:[%s360 + $0xb8] sm:$0xff]
        %v472 = vld [vmem:[%s360 + $0xc0] sm:$0xff]
        %v473 = vld [vmem:[%s360 + $0xc8] sm:$0xff]
        %v474 = vld [vmem:[%s360 + $0xd0] sm:$0xff]
        %v475 = vld [vmem:[%s360 + $0xd8] sm:$0xff]
        %v476 = vld [vmem:[%s360 + $0xe0] sm:$0xff]
        %v477 = vld [vmem:[%s360 + $0xe8] sm:$0xff]
        %v478 = vld [vmem:[%s360 + $0xf0] sm:$0xff]
        %v479 = vld [vmem:[%s360 + $0xf8] sm:$0xff]
        %v480 = vld [vmem:[%s360 + $0x100] sm:$0xff]
        %v481 = vld [vmem:[%s360 + $0x108] sm:$0xff]
        %v482 = vld [vmem:[%s360 + $0x110] sm:$0xff]
        %v483 = vld [vmem:[%s360 + $0x118] sm:$0xff]
        %v484 = vld [vmem:[%s360 + $0x120] sm:$0xff]
        %v485 = vld [vmem:[%s360 + $0x128] sm:$0xff]
        %v486 = vld [vmem:[%s360 + $0x130] sm:$0xff]
        %v487 = vld [vmem:[%s360 + $0x138] sm:$0xff]
        %v488 = vld [vmem:[%s360 + $0x140] sm:$0xff]
        %v489 = vld [vmem:[%s360 + $0x148] sm:$0xff]
        %v490 = vld [vmem:[%s360 + $0x150] sm:$0xff]
        %v491 = vld [vmem:[%s360 + $0x158] sm:$0xff]
        %v492 = vld [vmem:[%s360 + $0x160] sm:$0xff]
        %v493 = vld [vmem:[%s360 + $0x168] sm:$0xff]
        %v494 = vld [vmem:[%s360 + $0x170] sm:$0xff]
        %v495 = vld [vmem:[%s360 + $0x178] sm:$0xff]
        %v496 = vld [vmem:[%s380] sm:$0x7]
        %v498 = vperm.slane %v496, 0
        %v499 = vperm.slane %v496, 1
        %v500 = vperm.slane %v496, 2
        %504 = vmatpush.msra.mxu0 %v493
        %505 = vmatpush.msra.mxu0 %v490
        %506 = vmatpush.msra.mxu0 %v487
        %507 = vmatpush.msra.mxu0 %v484
        %508 = vmatpush.msra.mxu0 %v481
        %509 = vmatpush.msra.mxu0 %v478
        %510 = vmatpush.msra.mxu0 %v475
        %511 = vmatpush.msra.mxu0 %v472
        %512 = vmatpush.msra.mxu0 %v469
        %513 = vmatpush.msra.mxu0 %v466
        %514 = vmatpush.msra.mxu0 %v463
        %515 = vmatpush.msra.mxu0 %v460
        %516 = vmatpush.msra.mxu0 %v457
        %517 = vmatpush.msra.mxu0 %v454
        %518 = vmatpush.msra.mxu0 %v451
        %519 = vmatpush.msra.mxu0 %v448
        %520 = vmatmul.f32.gmra.mxu0 %v446
        %v521 = vpop.f32.mrf.mxu0
        %v522 = vadd.f32 %v498, %v521
        %523 = vdwg.mxu0
        %524 = vmatpush.msra.mxu0 %v494
        %525 = vmatpush.msra.mxu0 %v491
        %526 = vmatpush.msra.mxu0 %v488
        %527 = vmatpush.msra.mxu0 %v485
        %528 = vmatpush.msra.mxu0 %v482
        %529 = vmatpush.msra.mxu0 %v479
        %530 = vmatpush.msra.mxu0 %v476
        %531 = vmatpush.msra.mxu0 %v473
        %532 = vmatpush.msra.mxu0 %v470
        %533 = vmatpush.msra.mxu0 %v467
        %534 = vmatpush.msra.mxu0 %v464
        %535 = vmatpush.msra.mxu0 %v461
        %536 = vmatpush.msra.mxu0 %v458
        %537 = vmatpush.msra.mxu0 %v455
        %538 = vmatpush.msra.mxu0 %v452
        %539 = vmatpush.msra.mxu0 %v449
        %540 = vmatmul.f32.gmra.mxu0 %v446
        %v541 = vpop.f32.mrf.mxu0
        %v542 = vadd.f32 %v499, %v541
        %543 = vdwg.mxu0
        %544 = vmatpush.msra.mxu0 %v495
        %545 = vmatpush.msra.mxu0 %v492
        %546 = vmatpush.msra.mxu0 %v489
        %547 = vmatpush.msra.mxu0 %v486
        %548 = vmatpush.msra.mxu0 %v483
        %549 = vmatpush.msra.mxu0 %v480
        %550 = vmatpush.msra.mxu0 %v477
        %551 = vmatpush.msra.mxu0 %v474
        %552 = vmatpush.msra.mxu0 %v471
        %553 = vmatpush.msra.mxu0 %v468
        %554 = vmatpush.msra.mxu0 %v465
        %555 = vmatpush.msra.mxu0 %v462
        %556 = vmatpush.msra.mxu0 %v459
        %557 = vmatpush.msra.mxu0 %v456
        %558 = vmatpush.msra.mxu0 %v453
        %559 = vmatpush.msra.mxu0 %v450
        %560 = vmatmul.f32.gmra.mxu0 %v446
        %v561 = vpop.f32.mrf.mxu0
        %v562 = vadd.f32 %v500, %v561
        %563 = vdwg.mxu0
        %v564 = vld [vmem:[%s370] sm:$0xff]
        %v565 = vld [vmem:[%s370 + $0x8] sm:$0xff]
        %v566 = vld [vmem:[%s370 + $0x10] sm:$0xff]
        %v567 = vld [vmem:[%s370 + $0x18] sm:$0xff]
        %v568 = vld [vmem:[%s370 + $0x20] sm:$0xff]
        %v569 = vld [vmem:[%s370 + $0x28] sm:$0xff]
        %v570 = vld [vmem:[%s370 + $0x30] sm:$0xff]
        %v571 = vld [vmem:[%s370 + $0x38] sm:$0xff]
        %v572 = vld [vmem:[%s370 + $0x40] sm:$0xff]
        %v573 = vld [vmem:[%s370 + $0x48] sm:$0xff]
        %v574 = vld [vmem:[%s370 + $0x50] sm:$0xff]
        %v575 = vld [vmem:[%s370 + $0x58] sm:$0xff]
        %v576 = vld [vmem:[%s370 + $0x60] sm:$0xff]
        %v577 = vld [vmem:[%s370 + $0x68] sm:$0xff]
        %v578 = vld [vmem:[%s370 + $0x70] sm:$0xff]
        %v579 = vld [vmem:[%s370 + $0x78] sm:$0xff]
        %v580 = vld [vmem:[%s370 + $0x80] sm:$0xff]
        %v581 = vld [vmem:[%s370 + $0x88] sm:$0xff]
        %v582 = vld [vmem:[%s370 + $0x90] sm:$0xff]
        %v583 = vld [vmem:[%s370 + $0x98] sm:$0xff]
        %v584 = vld [vmem:[%s370 + $0xa0] sm:$0xff]
        %v585 = vld [vmem:[%s370 + $0xa8] sm:$0xff]
        %v586 = vld [vmem:[%s370 + $0xb0] sm:$0xff]
        %v587 = vld [vmem:[%s370 + $0xb8] sm:$0xff]
        %v588 = vld [vmem:[%s370 + $0xc0] sm:$0xff]
        %v589 = vld [vmem:[%s370 + $0xc8] sm:$0xff]
        %v590 = vld [vmem:[%s370 + $0xd0] sm:$0xff]
        %v591 = vld [vmem:[%s370 + $0xd8] sm:$0xff]
        %v592 = vld [vmem:[%s370 + $0xe0] sm:$0xff]
        %v593 = vld [vmem:[%s370 + $0xe8] sm:$0xff]
        %v594 = vld [vmem:[%s370 + $0xf0] sm:$0xff]
        %v595 = vld [vmem:[%s370 + $0xf8] sm:$0xff]
        %v596 = vld [vmem:[%s370 + $0x100] sm:$0xff]
        %v597 = vld [vmem:[%s370 + $0x108] sm:$0xff]
        %v598 = vld [vmem:[%s370 + $0x110] sm:$0xff]
        %v599 = vld [vmem:[%s370 + $0x118] sm:$0xff]
        %v600 = vld [vmem:[%s370 + $0x120] sm:$0xff]
        %v601 = vld [vmem:[%s370 + $0x128] sm:$0xff]
        %v602 = vld [vmem:[%s370 + $0x130] sm:$0xff]
        %v603 = vld [vmem:[%s370 + $0x138] sm:$0xff]
        %v604 = vld [vmem:[%s370 + $0x140] sm:$0xff]
        %v605 = vld [vmem:[%s370 + $0x148] sm:$0xff]
        %v606 = vld [vmem:[%s370 + $0x150] sm:$0xff]
        %v607 = vld [vmem:[%s370 + $0x158] sm:$0xff]
        %v608 = vld [vmem:[%s370 + $0x160] sm:$0xff]
        %v609 = vld [vmem:[%s370 + $0x168] sm:$0xff]
        %v610 = vld [vmem:[%s370 + $0x170] sm:$0xff]
        %v611 = vld [vmem:[%s370 + $0x178] sm:$0xff]
        %v612 = vld [vmem:[%s390] sm:$0x7]
        %v614 = vperm.slane %v612, 0
        %v615 = vperm.slane %v612, 1
        %v616 = vperm.slane %v612, 2
        %620 = vmatpush.msra.mxu0 %v609
        %621 = vmatpush.msra.mxu0 %v606
        %622 = vmatpush.msra.mxu0 %v603
        %623 = vmatpush.msra.mxu0 %v600
        %624 = vmatpush.msra.mxu0 %v597
        %625 = vmatpush.msra.mxu0 %v594
        %626 = vmatpush.msra.mxu0 %v591
        %627 = vmatpush.msra.mxu0 %v588
        %628 = vmatpush.msra.mxu0 %v585
        %629 = vmatpush.msra.mxu0 %v582
        %630 = vmatpush.msra.mxu0 %v579
        %631 = vmatpush.msra.mxu0 %v576
        %632 = vmatpush.msra.mxu0 %v573
        %633 = vmatpush.msra.mxu0 %v570
        %634 = vmatpush.msra.mxu0 %v567
        %635 = vmatpush.msra.mxu0 %v564
        %636 = vmatmul.f32.gmra.mxu0 %v447
        %v637 = vpop.f32.mrf.mxu0
        %v638 = vadd.f32 %v614, %v637
        %639 = vdwg.mxu0
        %640 = vmatpush.msra.mxu0 %v610
        %641 = vmatpush.msra.mxu0 %v607
        %642 = vmatpush.msra.mxu0 %v604
        %643 = vmatpush.msra.mxu0 %v601
        %644 = vmatpush.msra.mxu0 %v598
        %645 = vmatpush.msra.mxu0 %v595
        %646 = vmatpush.msra.mxu0 %v592
        %647 = vmatpush.msra.mxu0 %v589
        %648 = vmatpush.msra.mxu0 %v586
        %649 = vmatpush.msra.mxu0 %v583
        %650 = vmatpush.msra.mxu0 %v580
        %651 = vmatpush.msra.mxu0 %v577
        %652 = vmatpush.msra.mxu0 %v574
        %653 = vmatpush.msra.mxu0 %v571
        %654 = vmatpush.msra.mxu0 %v568
        %655 = vmatpush.msra.mxu0 %v565
        %656 = vmatmul.f32.gmra.mxu0 %v447
        %v657 = vpop.f32.mrf.mxu0
        %v658 = vadd.f32 %v615, %v657
        %659 = vdwg.mxu0
        %660 = vmatpush.msra.mxu0 %v611
        %661 = vmatpush.msra.mxu0 %v608
        %662 = vmatpush.msra.mxu0 %v605
        %663 = vmatpush.msra.mxu0 %v602
        %664 = vmatpush.msra.mxu0 %v599
        %665 = vmatpush.msra.mxu0 %v596
        %666 = vmatpush.msra.mxu0 %v593
        %667 = vmatpush.msra.mxu0 %v590
        %668 = vmatpush.msra.mxu0 %v587
        %669 = vmatpush.msra.mxu0 %v584
        %670 = vmatpush.msra.mxu0 %v581
        %671 = vmatpush.msra.mxu0 %v578
        %672 = vmatpush.msra.mxu0 %v575
        %673 = vmatpush.msra.mxu0 %v572
        %674 = vmatpush.msra.mxu0 %v569
        %675 = vmatpush.msra.mxu0 %v566
        %676 = vmatmul.f32.gmra.mxu0 %v447
        %v677 = vpop.f32.mrf.mxu0
        %v678 = vadd.f32 %v616, %v677
        %679 = vdwg.mxu0
        %v680 = vadd.f32 %v522, %v638
        %v681 = vxor.u32 %v680, 2147483648
        %v682 = vmul.f32 %v681, 1.442695
        %v683 = vpow.pop %v682
        %v684 = vadd.f32 %v683, 1.0
        %v685 = vrcp.pop %v684
        %v686 = vmul.f32 %v684, %v685
        %v687 = vsub.f32 1.0, %v686
        %v688 = vmul.f32 %v685, %v687
        %v689 = vadd.f32 %v685, %v688
        %vm690 = vweird.f32 %v684
        %vm691 = vweird.f32 %v685
        %vm692 = vmor %vm690, %vm691
        %v693 = vsel %vm692, %v685, %v689
        %v694 = vand.u32 2147483647, %v684
        %vm695 = vcmp.eq.f32.partialorder %v694, 8.507059e+37
        %v696 = vand.u32 %v684, 2147483648
        %v697 = vor.u32 1.1754944e-38, %v696
        %v698 = vsel %vm695, %v697, %v693
        %v699 = vmul.f32 1.0, %v698
        %v700 = vadd.f32 %v542, %v658
        %v701 = vxor.u32 %v700, 2147483648
        %v702 = vmul.f32 %v701, 1.442695
        %v703 = vpow.pop %v702
        %v704 = vadd.f32 %v703, 1.0
        %v705 = vrcp.pop %v704
        %v706 = vmul.f32 %v704, %v705
        %v707 = vsub.f32 1.0, %v706
        %v708 = vmul.f32 %v705, %v707
        %v709 = vadd.f32 %v705, %v708
        %vm710 = vweird.f32 %v704
        %vm711 = vweird.f32 %v705
        %vm712 = vmor %vm710, %vm711
        %v713 = vsel %vm712, %v705, %v709
        %v714 = vand.u32 2147483647, %v704
        %vm715 = vcmp.eq.f32.partialorder %v714, 8.507059e+37
        %v716 = vand.u32 %v704, 2147483648
        %v717 = vor.u32 1.1754944e-38, %v716
        %v718 = vsel %vm715, %v717, %v713
        %v719 = vmul.f32 1.0, %v718
        %v720 = vmul.f32 %v699, %v678
        %v721 = vadd.f32 %v562, %v720
        %v722 = vtanh.pop %v721
        %v723 = vsub.f32 1.0, %v719
        %v724 = vmul.f32 %v723, %v722
        %v725 = vmul.f32 %v719, %v447
        %v726 = vadd.f32 %v724, %v725
        %727 = vst [vmem:[%s439] sm:$0xff] %v726
        %728 = vst [vmem:[#allocation2] sm:$0xff] %v726
        %s729 = sand.u32 %s189, 1
        %s730 = scalar_lea.sflag [#allocation5], %s729
        %s731 = sand.u32 %s189, 1
        %s732 = smul.addr %s731, 8
        %s733 = scalar_lea.vmem [#allocation14], %s732
        // Predicated region
        $region73: #{tpu_custom_call.1} parent=43 // pred_check
          %p734 = pneg %p199
        $region74: #{tpu_custom_call.1} parent=43 // pred_check_branch
          %736 = sbr.rel (%p734) target = $region76
        $region75: #{tpu_custom_call.1} parent=43 // pred_region
          %738 = vsyncadd %s730, 0
          %s739 = smul.addr %s30, 8
          %s740 = scalar_lea.hbm %s6, %s739
          %s742 = sshll.u32 %s733, 4
          %s743 = int_to_ptr.vmem [resolvable:$true] %s742
          %s744 = sshll.u32 %s740, 4
          %s745 = int_to_ptr.hbm [resolvable:$true] %s744
          %747 = dma.vmem_to_hbm [thread:$0]  %s743, 128, %s745, %s730
        $region76: #{tpu_custom_call.1} parent=43 // pred_fallthru
          _
      $region44: #{tpu_custom_call.1} parent=5 // pred_fallthru
        _
      %p748 = scmp.le.s32.totalorder 2, %s25
      // Predicated region
      $region77: #{tpu_custom_call.1} parent=5 // pred_check
        %p749 = pneg %p748
      $region78: #{tpu_custom_call.1} parent=5 // pred_check_branch
        %751 = sbr.rel (%p749) target = $region80
      $region79: #{tpu_custom_call.1} parent=5 // pred_region
        %s752 = ssub.s32 %s25, 2
        // Predicated region
        $region81: #{tpu_custom_call.1} parent=79 // pred_check
          %p753 = pneg %p205
        $region82: #{tpu_custom_call.1} parent=79 // pred_check_branch
          %755 = sbr.rel (%p753) target = $region84
        $region83: #{tpu_custom_call.1} parent=79 // pred_region
          %s756 = sand.u32 %s190, 1
          %s757 = scalar_lea.sflag [#allocation5], %s756
          %s758 = sand.u32 %s190, 1
          %s759 = smul.addr %s758, 8
          %s760 = scalar_lea.vmem [#allocation14], %s759
          %762 = dma.done %s757, 128
        $region84: #{tpu_custom_call.1} parent=79 // pred_fallthru
          _
      $region80: #{tpu_custom_call.1} parent=5 // pred_fallthru
        _
    $region6: #{tpu_custom_call.1} parent=1 // loop_footer
      %s29 = sadd.s32 1, %s25
    $region7: #{tpu_custom_call.1} parent=1 // loop_footer_branch
      %24 = sbr.rel target = $region3
    $region8: #{tpu_custom_call.1} parent=1 // loop_exit
      _
    %763 = vsyncpa [#allocation4], 1
    %s764 = scalar_lea.sflag [#allocation4], 1
    %765 = vsyncpa %s764, 1
    %766 = vsyncpa [#allocation7], 1
    %s767 = scalar_lea.sflag [#allocation7], 1
    %768 = vsyncpa %s767, 1
    %769 = vsyncpa [#allocation10], 1
    %s770 = scalar_lea.sflag [#allocation10], 1
    %771 = vsyncpa %s770, 1
    %772 = vsyncpa [#allocation13], 1
    %s773 = scalar_lea.sflag [#allocation13], 1
    %774 = vsyncpa %s773, 1
    %775 = vsyncpa [#allocation5], 1
    %s776 = scalar_lea.sflag [#allocation5], 1
    %777 = vsyncpa %s776, 1

</llo_original>
